<compile_context>
chip_gen: v7x
topology: tpu7x:2x2x1
jax: 0.10.0
libtpu: 0.0.40
codegen_flags: <defaults>
</compile_context>

<pallas_src>
import functools

import jax
import jax.numpy as jnp
from jax.experimental import pallas as pl
from jax.experimental.pallas import tpu as pltpu

HIDDEN1 = 256
HIDDEN2 = 512
OUT_PAD = 128          # lane-dense padded output width
TM_MAX = 512           # max batch rows per grid step (sweep-suggested 256-512)


def _round_up(x, m):
    return ((x + m - 1) // m) * m


def _choose_tiling(batch):
    """Pick (tile_rows, n_tiles): rows multiple of 8, big tiles for throughput,
    tiny tiles for tiny batches, and an even tile count >= 2 when possible so
    the parallel batch axis uses both v7x TensorCores."""
    rows = _round_up(max(batch, 1), 8)
    n_tiles = -(-rows // TM_MAX)                 # cdiv
    if rows > 8 and n_tiles % 2 == 1:
        n_tiles += 1                             # even tile count for megacore
    tm = _round_up(-(-rows // n_tiles), 8)
    n_tiles = -(-rows // tm)
    return tm, n_tiles


def _make_kernel(input_dim, output_dim):
    k_cat = input_dim + output_dim

    def kernel(z_ref, c_ref, w1_ref, b1_ref, w2_ref, b2_ref, w3_ref, b3_ref,
               out_ref, x_ref):
        # Concat z|cond in VMEM only (no HBM concat) -> single layer-1 MXU pass.
        x_ref[:, :input_dim] = z_ref[...].astype(jnp.bfloat16)
        x_ref[:, input_dim:k_cat] = c_ref[...].astype(jnp.bfloat16)

        # Layer 1: one (TM, k_cat) @ (k_cat, 256) dot, f32 accumulation.
        h1 = jnp.dot(x_ref[...], w1_ref[...],
                     preferred_element_type=jnp.float32) + b1_ref[...]
        h1 = jnp.maximum(h1, 0.0)                                  # ReLU (f32)

        # Layer 2.
        h2 = jnp.dot(h1.astype(jnp.bfloat16), w2_ref[...],
                     preferred_element_type=jnp.float32) + b2_ref[...]
        h2 = jnp.maximum(h2, 0.0)                                  # ReLU (f32)

        # Layer 3: output padded to 128 lanes -> unmasked lane-dense store.
        y = jnp.dot(h2.astype(jnp.bfloat16), w3_ref[...],
                    preferred_element_type=jnp.float32) + b3_ref[...]
        out_ref[...] = jnp.tanh(y)                                 # Tanh (f32)

    return kernel


def prepare_params(params, *, output_dim):
    """One-time weight prep (hoisted out of the hot path): bf16 casts and
    lane-padding of the final layer to 128 output columns."""
    w1, b1, w2, b2, w3, b3 = params
    w1b = w1.astype(jnp.bfloat16)                                  # (Din+Dout, 256)
    w2b = w2.astype(jnp.bfloat16)                                  # (256, 512)
    w3p = jnp.pad(w3, ((0, 0), (0, OUT_PAD - output_dim))).astype(jnp.bfloat16)
    b3p = jnp.pad(b3, ((0, 0), (0, OUT_PAD - output_dim)))         # f32 (1, 128)
    return (w1b, b1, w2b, b2, w3p, b3p)


@functools.partial(jax.jit, static_argnames=("input_dim", "output_dim"))
def generator_forward(z, cond, prepped, *, input_dim, output_dim):
    """z: (B, input_dim), cond: (B, output_dim). Returns (B, output_dim) f32."""
    w1b, b1, w2b, b2, w3p, b3p = prepped
    B = z.shape[0]
    k_cat = input_dim + output_dim

    # --- adaptive batch tiling (multiple of 8 rows; even tile count for v7x) ---
    tm, n_tiles = _choose_tiling(B)
    b_pad = tm * n_tiles
    if b_pad != B:
        z = jnp.pad(z, ((0, b_pad - B), (0, 0)))
        cond = jnp.pad(cond, ((0, b_pad - B), (0, 0)))

    flops = 2 * b_pad * (k_cat * HIDDEN1 + HIDDEN1 * HIDDEN2 + HIDDEN2 * OUT_PAD)
    bytes_accessed = (z.size * 4 + cond.size * 4
                      + (w1b.size + w2b.size + w3p.size) * 2
                      + (b1.size + b2.size + b3p.size) * 4
                      + b_pad * OUT_PAD * 4)

    row_map = lambda i: (i, 0)      # activation tiles march down the batch
    resident = lambda i: (0, 0)     # weights/biases stay resident in VMEM

    out_padded = pl.pallas_call(
        _make_kernel(input_dim, output_dim),
        out_shape=jax.ShapeDtypeStruct((b_pad, OUT_PAD), jnp.float32),
        grid_spec=pltpu.PrefetchScalarGridSpec(
            num_scalar_prefetch=0,
            grid=(n_tiles,),
            in_specs=[
                pl.BlockSpec((tm, input_dim), row_map),       # z
                pl.BlockSpec((tm, output_dim), row_map),      # cond
                pl.BlockSpec((k_cat, HIDDEN1), resident),     # W1 (bf16)
                pl.BlockSpec((1, HIDDEN1), resident),         # b1 (f32)
                pl.BlockSpec((HIDDEN1, HIDDEN2), resident),   # W2 (bf16)
                pl.BlockSpec((1, HIDDEN2), resident),         # b2 (f32)
                pl.BlockSpec((HIDDEN2, OUT_PAD), resident),   # W3 (bf16, padded)
                pl.BlockSpec((1, OUT_PAD), resident),         # b3 (f32, padded)
            ],
            out_specs=pl.BlockSpec((tm, OUT_PAD), row_map),
            scratch_shapes=[pltpu.VMEM((tm, k_cat), jnp.bfloat16)],  # VMEM concat
        ),
        compiler_params=pltpu.CompilerParams(
            dimension_semantics=("parallel",),
        ),
        cost_estimate=pl.CostEstimate(
            flops=flops,
            transcendentals=b_pad * OUT_PAD,
            bytes_accessed=bytes_accessed,
        ),
    )(z, cond, w1b, b1, w2b, b2, w3p, b3p)

    return out_padded[:B, :output_dim]


def init_params(key, input_dim, output_dim):
    """Deterministic synthetic init matching nn.Linear shapes (stored transposed:
    W has shape (in_features, out_features) so the kernel computes x @ W + b)."""
    d_in = input_dim + output_dim
    dims = [(d_in, HIDDEN1), (HIDDEN1, HIDDEN2), (HIDDEN2, output_dim)]
    keys = jax.random.split(key, 6)
    params = []
    for i, (fi, fo) in enumerate(dims):
        scale = 1.0 / jnp.sqrt(jnp.float32(fi))
        w = jax.random.uniform(keys[2 * i], (fi, fo), jnp.float32, -scale, scale)
        b = jax.random.uniform(keys[2 * i + 1], (1, fo), jnp.float32, -scale, scale)
        params += [w, b]
    return tuple(params)


def reference_forward(z, cond, params):
    """Pure-JAX reference emulating the kernel's mixed precision
    (bf16 matmul operands, f32 accumulation, f32 elementwise epilogue).
    NOTE: bf16 operands are an intentional deviation from a pure-f32 PyTorch
    nn.Linear forward (bf16 inference is the intended regime)."""
    w1, b1, w2, b2, w3, b3 = params
    bf = lambda a: a.astype(jnp.bfloat16)
    x = jnp.concatenate([z, cond], axis=1)
    h1 = jnp.maximum(
        jnp.dot(bf(x), bf(w1), preferred_element_type=jnp.float32) + b1, 0.0)
    h2 = jnp.maximum(
        jnp.dot(bf(h1), bf(w2), preferred_element_type=jnp.float32) + b2, 0.0)
    return jnp.tanh(
        jnp.dot(bf(h2), bf(w3), preferred_element_type=jnp.float32) + b3)


if __name__ == "__main__":
    key = jax.random.PRNGKey(0)
    k_param, k_z, k_c = jax.random.split(key, 3)

    input_dim = 16   # latent dim
    output_dim = 8   # conditioned output dim
    batch = 2

    params = init_params(k_param, input_dim, output_dim)
    prepped = prepare_params(params, output_dim=output_dim)   # one-time prep
    z = jax.random.normal(k_z, (batch, input_dim), jnp.float32)
    cond = jax.random.normal(k_c, (batch, output_dim), jnp.float32)

    out = generator_forward(z, cond, prepped,
                            input_dim=input_dim, output_dim=output_dim)
    out = jax.block_until_ready(out)

    ref = reference_forward(z, cond, params)
    assert out.shape == (batch, output_dim)
    assert jnp.allclose(out, ref, atol=1e-3, rtol=1e-3), float(
        jnp.max(jnp.abs(out - ref)))

    print("KERNEL_OK")
</pallas_src>

<mosaic_0001>
module attributes {stable_mosaic.version = 11 : i64} {
  func.func @kernel(%arg0: i32, %arg1: memref<8x16xf32, #tpu.memory_space<vmem>>, %arg2: memref<8x8xf32, #tpu.memory_space<vmem>>, %arg3: memref<24x256xbf16, #tpu.memory_space<vmem>>, %arg4: memref<1x256xf32, #tpu.memory_space<vmem>>, %arg5: memref<256x512xbf16, #tpu.memory_space<vmem>>, %arg6: memref<1x512xf32, #tpu.memory_space<vmem>>, %arg7: memref<512x128xbf16, #tpu.memory_space<vmem>>, %arg8: memref<1x128xf32, #tpu.memory_space<vmem>>, %arg9: memref<8x128xf32, #tpu.memory_space<vmem>>, %arg10: memref<8x24xbf16, #tpu.memory_space<vmem>>) attributes {dimension_semantics = [#tpu.dimension_semantics<parallel>], iteration_bounds = array<i64: 1>, scalar_prefetch = 0 : i64, scratch_operands = 1 : i64, tpu.core_type = #tpu.core_type<tc>, window_params = [{transform_indices = @transform_0, window_bounds = array<i64: 8, 16>}, {transform_indices = @transform_1, window_bounds = array<i64: 8, 8>}, {pipeline_mode = #tpu.pipeline_mode<synchronous>, transform_indices = @transform_2, window_bounds = array<i64: 24, 256>}, {pipeline_mode = #tpu.pipeline_mode<synchronous>, transform_indices = @transform_3, window_bounds = array<i64: 1, 256>}, {pipeline_mode = #tpu.pipeline_mode<synchronous>, transform_indices = @transform_4, window_bounds = array<i64: 256, 512>}, {pipeline_mode = #tpu.pipeline_mode<synchronous>, transform_indices = @transform_5, window_bounds = array<i64: 1, 512>}, {pipeline_mode = #tpu.pipeline_mode<synchronous>, transform_indices = @transform_6, window_bounds = array<i64: 512, 128>}, {pipeline_mode = #tpu.pipeline_mode<synchronous>, transform_indices = @transform_7, window_bounds = array<i64: 1, 128>}, {transform_indices = @transform_8, window_bounds = array<i64: 8, 128>}]} {
    %c0 = arith.constant 0 : index
    %c0_0 = arith.constant 0 : index
    %0 = vector.load %arg1[%c0, %c0_0] : memref<8x16xf32, #tpu.memory_space<vmem>>, vector<8x16xf32>
    %1 = arith.truncf %0 : vector<8x16xf32> to vector<8x16xbf16>
    %c0_1 = arith.constant 0 : index
    %c0_2 = arith.constant 0 : index
    %2 = vector.load %arg10[%c0_1, %c0_2] : memref<8x24xbf16, #tpu.memory_space<vmem>>, vector<8x16xbf16>
    tpu.vector_store %arg10[%c0_1, %c0_2], %1 {strides = array<i32>} : memref<8x24xbf16, #tpu.memory_space<vmem>>, vector<8x16xbf16>,
    %c0_3 = arith.constant 0 : index
    %c0_4 = arith.constant 0 : index
    %3 = vector.load %arg2[%c0_3, %c0_4] : memref<8x8xf32, #tpu.memory_space<vmem>>, vector<8x8xf32>
    %4 = arith.truncf %3 : vector<8x8xf32> to vector<8x8xbf16>
    %c0_5 = arith.constant 0 : index
    %c16 = arith.constant 16 : index
    %5 = vector.load %arg10[%c0_5, %c16] : memref<8x24xbf16, #tpu.memory_space<vmem>>, vector<8x8xbf16>
    tpu.vector_store %arg10[%c0_5, %c16], %4 {strides = array<i32>} : memref<8x24xbf16, #tpu.memory_space<vmem>>, vector<8x8xbf16>,
    %c0_6 = arith.constant 0 : index
    %c0_7 = arith.constant 0 : index
    %6 = vector.load %arg10[%c0_6, %c0_7] : memref<8x24xbf16, #tpu.memory_space<vmem>>, vector<8x24xbf16>
    %c0_8 = arith.constant 0 : index
    %c0_9 = arith.constant 0 : index
    %7 = vector.load %arg3[%c0_8, %c0_9] : memref<24x256xbf16, #tpu.memory_space<vmem>>, vector<24x256xbf16>
    %cst = arith.constant dense<0.000000e+00> : vector<8x256xf32>
    %8 = tpu.matmul %6, %7, %cst {dimension_numbers = #tpu.dot_dimension_numbers<[1], [0], [0], [1], [0, 0, 1, 1], [], []>} : vector<8x24xbf16>, vector<24x256xbf16>, vector<8x256xf32> -> vector<8x256xf32>
    %c0_10 = arith.constant 0 : index
    %c0_11 = arith.constant 0 : index
    %9 = vector.load %arg4[%c0_10, %c0_11] : memref<1x256xf32, #tpu.memory_space<vmem>>, vector<1x256xf32>
    %10 = vector.broadcast %9 : vector<1x256xf32> to vector<8x256xf32>
    %11 = arith.addf %8, %10 : vector<8x256xf32>
    %cst_12 = arith.constant 0.000000e+00 : f32
    %12 = vector.broadcast %cst_12 : f32 to vector<8x256xf32>
    %13 = arith.maximumf %11, %12 : vector<8x256xf32>
    %14 = arith.truncf %13 : vector<8x256xf32> to vector<8x256xbf16>
    %c0_13 = arith.constant 0 : index
    %c0_14 = arith.constant 0 : index
    %15 = vector.load %arg5[%c0_13, %c0_14] : memref<256x512xbf16, #tpu.memory_space<vmem>>, vector<256x512xbf16>
    %cst_15 = arith.constant dense<0.000000e+00> : vector<8x512xf32>
    %16 = tpu.matmul %14, %15, %cst_15 {dimension_numbers = #tpu.dot_dimension_numbers<[1], [0], [0], [1], [0, 0, 1, 1], [], []>} : vector<8x256xbf16>, vector<256x512xbf16>, vector<8x512xf32> -> vector<8x512xf32>
    %c0_16 = arith.constant 0 : index
    %c0_17 = arith.constant 0 : index
    %17 = vector.load %arg6[%c0_16, %c0_17] : memref<1x512xf32, #tpu.memory_space<vmem>>, vector<1x512xf32>
    %18 = vector.broadcast %17 : vector<1x512xf32> to vector<8x512xf32>
    %19 = arith.addf %16, %18 : vector<8x512xf32>
    %cst_18 = arith.constant 0.000000e+00 : f32
    %20 = vector.broadcast %cst_18 : f32 to vector<8x512xf32>
    %21 = arith.maximumf %19, %20 : vector<8x512xf32>
    %22 = arith.truncf %21 : vector<8x512xf32> to vector<8x512xbf16>
    %c0_19 = arith.constant 0 : index
    %c0_20 = arith.constant 0 : index
    %23 = vector.load %arg7[%c0_19, %c0_20] : memref<512x128xbf16, #tpu.memory_space<vmem>>, vector<512x128xbf16>
    %cst_21 = arith.constant dense<0.000000e+00> : vector<8x128xf32>
    %24 = tpu.matmul %22, %23, %cst_21 {dimension_numbers = #tpu.dot_dimension_numbers<[1], [0], [0], [1], [0, 0, 1, 1], [], []>} : vector<8x512xbf16>, vector<512x128xbf16>, vector<8x128xf32> -> vector<8x128xf32>
    %c0_22 = arith.constant 0 : index
    %c0_23 = arith.constant 0 : index
    %25 = vector.load %arg8[%c0_22, %c0_23] : memref<1x128xf32, #tpu.memory_space<vmem>>, vector<1x128xf32>
    %26 = vector.broadcast %25 : vector<1x128xf32> to vector<8x128xf32>
    %27 = arith.addf %24, %26 : vector<8x128xf32>
    %28 = math.tanh %27 : vector<8x128xf32>
    %c0_24 = arith.constant 0 : index
    %c0_25 = arith.constant 0 : index
    %29 = vector.load %arg9[%c0_24, %c0_25] : memref<8x128xf32, #tpu.memory_space<vmem>>, vector<8x128xf32>
    tpu.vector_store %arg9[%c0_24, %c0_25], %28 {strides = array<i32>} : memref<8x128xf32, #tpu.memory_space<vmem>>, vector<8x128xf32>,
    return
  }
  func.func @transform_0(%arg0: i32) -> (i32, i32) {
    %c0_i32 = arith.constant 0 : i32
    %c0_i32_0 = arith.constant 0 : i32
    return %arg0, %c0_i32 : i32, i32
  }
  func.func @transform_1(%arg0: i32) -> (i32, i32) {
    %c0_i32 = arith.constant 0 : i32
    %c0_i32_0 = arith.constant 0 : i32
    return %arg0, %c0_i32 : i32, i32
  }
  func.func @transform_2(%arg0: i32) -> (i32, i32) {
    %c0_i32 = arith.constant 0 : i32
    %c0_i32_0 = arith.constant 0 : i32
    %c0_i32_1 = arith.constant 0 : i32
    return %c0_i32, %c0_i32_0 : i32, i32
  }
  func.func @transform_3(%arg0: i32) -> (i32, i32) {
    %c0_i32 = arith.constant 0 : i32
    %c0_i32_0 = arith.constant 0 : i32
    %c0_i32_1 = arith.constant 0 : i32
    return %c0_i32, %c0_i32_0 : i32, i32
  }
  func.func @transform_4(%arg0: i32) -> (i32, i32) {
    %c0_i32 = arith.constant 0 : i32
    %c0_i32_0 = arith.constant 0 : i32
    %c0_i32_1 = arith.constant 0 : i32
    return %c0_i32, %c0_i32_0 : i32, i32
  }
  func.func @transform_5(%arg0: i32) -> (i32, i32) {
    %c0_i32 = arith.constant 0 : i32
    %c0_i32_0 = arith.constant 0 : i32
    %c0_i32_1 = arith.constant 0 : i32
    return %c0_i32, %c0_i32_0 : i32, i32
  }
  func.func @transform_6(%arg0: i32) -> (i32, i32) {
    %c0_i32 = arith.constant 0 : i32
    %c0_i32_0 = arith.constant 0 : i32
    %c0_i32_1 = arith.constant 0 : i32
    return %c0_i32, %c0_i32_0 : i32, i32
  }
  func.func @transform_7(%arg0: i32) -> (i32, i32) {
    %c0_i32 = arith.constant 0 : i32
    %c0_i32_0 = arith.constant 0 : i32
    %c0_i32_1 = arith.constant 0 : i32
    return %c0_i32, %c0_i32_0 : i32, i32
  }
  func.func @transform_8(%arg0: i32) -> (i32, i32) {
    %c0_i32 = arith.constant 0 : i32
    %c0_i32_0 = arith.constant 0 : i32
    return %arg0, %c0_i32 : i32, i32
  }
}

</mosaic_0001>

<llo_original>
// kernel: generator_forward.1
$region0: #{generator_forward.1}
  #allocation0 [shape = 'u32[]', space=smem, size = 0x4, offset = 0x4, fixed_abs, tag = 'smem constant byte address 0x4 - core index']
  #allocation1 [shape = 'u32[144,128]{1,0:T(1,128)}', space=vmem, size = 0x12000, scoped, tag = 'internal scratch']
  #allocation2 [shape = 'bf16[8,24]{1,0:T(8,128)(2,1)}', space=vmem, size = 0x800, scoped, tag = 'scratch operand']
  %s0 = inlined_call_operand.vmem [shape: f32[8,16], index: 0, kind: input, shape index: {}]
  %s1 = inlined_call_operand.vmem [shape: f32[8,8], index: 1, kind: input, shape index: {}]
  %s2 = inlined_call_operand.vmem [shape: bf16[24,256], index: 2, kind: input, shape index: {}]
  %s3 = inlined_call_operand.vmem [shape: f32[1,256], index: 3, kind: input, shape index: {}]
  %s4 = inlined_call_operand.hbm [shape: bf16[256,512], index: 4, kind: input, shape index: {}]
  %s5 = inlined_call_operand.vmem [shape: f32[1,512], index: 5, kind: input, shape index: {}]
  %s6 = inlined_call_operand.hbm [shape: bf16[512,128], index: 6, kind: input, shape index: {}]
  %s7 = inlined_call_operand.vmem [shape: f32[1,128], index: 7, kind: input, shape index: {}]
  %s8 = inlined_call_operand.vmem [shape: f32[8,128], index: 8, kind: output, shape index: {}]
  %s9 = sld [smem:[#allocation0]]
  $region50: #{generator_forward.1} parent=0
    _
  %s11 = ssub.s32 1, %s9
  %s12 = scalar_select 0, %s11, %s9
  $region1: #{generator_forward.1} parent=0
    #allocation3 [shape = 'u8[262144]{0}', space=vmem, size = 0x40000, scoped, tag = 'input window, operand 4, single buffered']
    #allocation4 [shape = 's32[1]{0}', space=sflag, size = 0x4, scoped, tag = 'scoped memory for generator_forward.1']
    #allocation5 [shape = 'u8[131072]{0}', space=vmem, size = 0x20000, scoped, tag = 'input window, operand 6, single buffered']
    #allocation6 [shape = 's32[1]{0}', space=sflag, size = 0x4, scoped, tag = 'scoped memory for generator_forward.1']
    %13 = vsyncpa [#allocation4], 0
    %14 = vsyncpa [#allocation6], 0
    // Predicated region
    $region2: #{generator_forward.1} parent=1 // pred_check
      _
    $region3: #{generator_forward.1} parent=1 // pred_check_branch
      %16 = sbr.rel (0) target = $region5
    $region4: #{generator_forward.1} parent=1 // pred_region
      _
    $region5: #{generator_forward.1} parent=1 // pred_fallthru
      _
    // Predicated region
    $region6: #{generator_forward.1} parent=1 // pred_check
      _
    $region7: #{generator_forward.1} parent=1 // pred_check_branch
      %18 = sbr.rel (0) target = $region9
    $region8: #{generator_forward.1} parent=1 // pred_region
      _
    $region9: #{generator_forward.1} parent=1 // pred_fallthru
      _
    // Predicated region
    $region10: #{generator_forward.1} parent=1 // pred_check
      _
    $region11: #{generator_forward.1} parent=1 // pred_check_branch
      %20 = sbr.rel (0) target = $region13
    $region12: #{generator_forward.1} parent=1 // pred_region
      _
    $region13: #{generator_forward.1} parent=1 // pred_fallthru
      _
    // Predicated region
    $region14: #{generator_forward.1} parent=1 // pred_check
      _
    $region15: #{generator_forward.1} parent=1 // pred_check_branch
      %22 = sbr.rel (0) target = $region17
    $region16: #{generator_forward.1} parent=1 // pred_region
      _
    $region17: #{generator_forward.1} parent=1 // pred_fallthru
      _
    // Predicated region
    $region18: #{generator_forward.1} parent=1 // pred_check
      _
    $region19: #{generator_forward.1} parent=1 // pred_check_branch
      %24 = sbr.rel (0) target = $region21
    $region20: #{generator_forward.1} parent=1 // pred_region
      %s26 = ssub.s32 8192, 8192
      %27 = vsyncadd [#allocation4], %s26
      %s28 = sshll.u32 [#allocation3], 4
      %s29 = int_to_ptr.vmem [resolvable:$true] %s28
      %34 = dma.hbm_to_vmem [thread:$0]  %s4, 8192, %s29, [#allocation4], 256, 256, 16
    $region21: #{generator_forward.1} parent=1 // pred_fallthru
      _
    // Predicated region
    $region22: #{generator_forward.1} parent=1 // pred_check
      _
    $region23: #{generator_forward.1} parent=1 // pred_check_branch
      %36 = sbr.rel (0) target = $region25
    $region24: #{generator_forward.1} parent=1 // pred_region
      _
    $region25: #{generator_forward.1} parent=1 // pred_fallthru
      _
    // Predicated region
    $region26: #{generator_forward.1} parent=1 // pred_check
      _
    $region27: #{generator_forward.1} parent=1 // pred_check_branch
      %38 = sbr.rel (0) target = $region29
    $region28: #{generator_forward.1} parent=1 // pred_region
      %s40 = ssub.s32 4096, 4096
      %41 = vsyncadd [#allocation6], %s40
      %s42 = sshll.u32 [#allocation5], 4
      %s43 = int_to_ptr.vmem [resolvable:$true] %s42
      %48 = dma.hbm_to_vmem [thread:$0]  %s6, 4096, %s43, [#allocation6], 64, 64, 4
    $region29: #{generator_forward.1} parent=1 // pred_fallthru
      _
    // Predicated region
    $region30: #{generator_forward.1} parent=1 // pred_check
      _
    $region31: #{generator_forward.1} parent=1 // pred_check_branch
      %50 = sbr.rel (0) target = $region33
    $region32: #{generator_forward.1} parent=1 // pred_region
      _
    $region33: #{generator_forward.1} parent=1 // pred_fallthru
      _
    // Predicated region
    $region34: #{generator_forward.1} parent=1 // pred_check
      _
    $region35: #{generator_forward.1} parent=1 // pred_check_branch
      %52 = sbr.rel (0) target = $region37
    $region36: #{generator_forward.1} parent=1 // pred_region
      %53 = dma.done [#allocation4], 8192
    $region37: #{generator_forward.1} parent=1 // pred_fallthru
      _
    // Predicated region
    $region38: #{generator_forward.1} parent=1 // pred_check
      _
    $region39: #{generator_forward.1} parent=1 // pred_check_branch
      %55 = sbr.rel (0) target = $region41
    $region40: #{generator_forward.1} parent=1 // pred_region
      %56 = dma.done [#allocation6], 4096
    $region41: #{generator_forward.1} parent=1 // pred_fallthru
      _
    %v58 = vld [vmem:[%s0] sm:$0xff]
    %v59 = vpack.c.bf16 %v58, %v58
    %vm60 = vcmask 125952
    %61 = vst.msk [vmem:[#allocation2] sm:$0xf] %vm60, %v59
    %v62 = vld [vmem:[%s1] sm:$0xff]
    %v63 = vpack.c.bf16 %v62, %v62
    %v65 = vunpack.c.l.b16 %v63
    %v66 = vpack.c.b16 %v65, %v65
    %67 = vrot.lane.b32.xlu0 %v66, 16
    %v68 = vpop.permute.xlu0 %67
    %vm70 = vcmask 191616
    %71 = vst.msk [vmem:[#allocation2] sm:$0xf] %vm70, %v68
    %v72 = vld [vmem:[#allocation2] sm:$0xf]
    %v73 = vld [vmem:[%s2] sm:$0xff]
    %v74 = vld [vmem:[%s2 + $0x8] sm:$0xff]
    %v75 = vld [vmem:[%s2 + $0x10] sm:$0xff]
    %v76 = vld [vmem:[%s3] sm:$0x3]
    %v78 = vlaneseq
    %v79 = vshrl.u32 %v78, 7
    %v80 = vsub.s32 0, %v79
    %v81 = vrot.slane %v76, %v80
    %v82 = vlaneseq
    %v83 = vshrl.u32 %v82, 7
    %v84 = vsub.s32 1, %v83
    %v85 = vrot.slane %v76, %v84
    %v91 = vunpack.c.l.b16 %v73
    %v92 = vunpack.c.h.b16 %v73
    %v93 = vunpack.c.l.b16 %v74
    %v94 = vunpack.c.h.b16 %v74
    %v95 = vunpack.c.l.b16 %v75
    %v96 = vunpack.c.h.b16 %v75
    %v97 = vpack.c.b16 %v93, %v91
    %v98 = vpack.c.b16 %v94, %v92
    %v99 = vpack.c.b16 %v95, %v95
    %v100 = vpack.c.b16 %v96, %v96
    %vm103 = vcmask 195584
    %v105 = vsel %vm103, %v72, 0
    %vm107 = vcmask 1043456
    %v109 = vsel %vm107, %v99, 0
    %v112 = vsel %vm107, %v100, 0
    %114 = vmatprep.subr.bf16.mxu0 %v98
    %115 = vmatpush1.bf16.msra.mxu0 %v97
    %116 = vmatprep.subr.bf16.mxu0 %v112
    %117 = vmatpush1.bf16.msra.mxu0 %v109
    %118 = vmatprep.subr.bf16.mxu0 0
    %119 = vmatpush1.bf16.msra.mxu0 0
    %120 = vmatprep.subr.bf16.mxu0 0
    %121 = vmatpush1.bf16.msra.mxu0 0
    %122 = vmatprep.subr.bf16.mxu0 0
    %123 = vmatpush1.bf16.msra.mxu0 0
    %124 = vmatprep.subr.bf16.mxu0 0
    %125 = vmatpush1.bf16.msra.mxu0 0
    %126 = vmatprep.subr.bf16.mxu0 0
    %127 = vmatpush1.bf16.msra.mxu0 0
    %128 = vmatprep.subr.bf16.mxu0 0
    %129 = vmatpush1.bf16.msra.mxu0 0
    %130 = vmatprep.subr.bf16.mxu0 0
    %131 = vmatpush1.bf16.msra.mxu0 0
    %132 = vmatprep.subr.bf16.mxu0 0
    %133 = vmatpush1.bf16.msra.mxu0 0
    %134 = vmatprep.subr.bf16.mxu0 0
    %135 = vmatpush1.bf16.msra.mxu0 0
    %136 = vmatprep.subr.bf16.mxu0 0
    %137 = vmatpush1.bf16.msra.mxu0 0
    %138 = vmatprep.subr.bf16.mxu0 0
    %139 = vmatpush1.bf16.msra.mxu0 0
    %140 = vmatprep.subr.bf16.mxu0 0
    %141 = vmatpush1.bf16.msra.mxu0 0
    %142 = vmatprep.subr.bf16.mxu0 0
    %143 = vmatpush1.bf16.msra.mxu0 0
    %144 = vmatprep.subr.bf16.mxu0 0
    %145 = vmatpush1.bf16.msra.mxu0 0
    %146 = vmatprep.mubr.bf16.mxu0 0
    %147 = vmatmul.mubr.bf16.gmra.mrb[0].mxu0 %v105
    %v148 = vpop.f32.mrb[0].mxu0
    %v149 = vadd.f32 %v81, %v148
    %v150 = vpop.f32.mrb[0].mxu0
    %v151 = vadd.f32 %v85, %v150
    %v152 = vpop.f32.mrb[0].mxu0
    %v153 = vpop.f32.mrb[0].mxu0
    %154 = vdwg.mxu0
    %v155 = vmax.f32 %v149, 0.0
    %v156 = vmax.f32 %v151, 0.0
    %v157 = vpack.c.bf16 %v155, %v155
    %v158 = vpack.c.bf16 %v156, %v156
    %v159 = vld [vmem:[#allocation3] sm:$0xff]
    %v160 = vld [vmem:[#allocation3 + $0x8] sm:$0xff]
    %v161 = vld [vmem:[#allocation3 + $0x10] sm:$0xff]
    %v162 = vld [vmem:[#allocation3 + $0x18] sm:$0xff]
    %v163 = vld [vmem:[#allocation3 + $0x20] sm:$0xff]
    %v164 = vld [vmem:[#allocation3 + $0x28] sm:$0xff]
    %v165 = vld [vmem:[#allocation3 + $0x30] sm:$0xff]
    %v166 = vld [vmem:[#allocation3 + $0x38] sm:$0xff]
    %v167 = vld [vmem:[#allocation3 + $0x40] sm:$0xff]
    %v168 = vld [vmem:[#allocation3 + $0x48] sm:$0xff]
    %v169 = vld [vmem:[#allocation3 + $0x50] sm:$0xff]
    %v170 = vld [vmem:[#allocation3 + $0x58] sm:$0xff]
    %v171 = vld [vmem:[#allocation3 + $0x60] sm:$0xff]
    %v172 = vld [vmem:[#allocation3 + $0x68] sm:$0xff]
    %v173 = vld [vmem:[#allocation3 + $0x70] sm:$0xff]
    %v174 = vld [vmem:[#allocation3 + $0x78] sm:$0xff]
    %v175 = vld [vmem:[#allocation3 + $0x80] sm:$0xff]
    %v176 = vld [vmem:[#allocation3 + $0x88] sm:$0xff]
    %v177 = vld [vmem:[#allocation3 + $0x90] sm:$0xff]
    %v178 = vld [vmem:[#allocation3 + $0x98] sm:$0xff]
    %v179 = vld [vmem:[#allocation3 + $0xa0] sm:$0xff]
    %v180 = vld [vmem:[#allocation3 + $0xa8] sm:$0xff]
    %v181 = vld [vmem:[#allocation3 + $0xb0] sm:$0xff]
    %v182 = vld [vmem:[#allocation3 + $0xb8] sm:$0xff]
    %v183 = vld [vmem:[#allocation3 + $0xc0] sm:$0xff]
    %v184 = vld [vmem:[#allocation3 + $0xc8] sm:$0xff]
    %v185 = vld [vmem:[#allocation3 + $0xd0] sm:$0xff]
    %v186 = vld [vmem:[#allocation3 + $0xd8] sm:$0xff]
    %v187 = vld [vmem:[#allocation3 + $0xe0] sm:$0xff]
    %v188 = vld [vmem:[#allocation3 + $0xe8] sm:$0xff]
    %v189 = vld [vmem:[#allocation3 + $0xf0] sm:$0xff]
    %v190 = vld [vmem:[#allocation3 + $0xf8] sm:$0xff]
    %v191 = vld [vmem:[#allocation3 + $0x100] sm:$0xff]
    %v192 = vld [vmem:[#allocation3 + $0x108] sm:$0xff]
    %v193 = vld [vmem:[#allocation3 + $0x110] sm:$0xff]
    %v194 = vld [vmem:[#allocation3 + $0x118] sm:$0xff]
    %v195 = vld [vmem:[#allocation3 + $0x120] sm:$0xff]
    %v196 = vld [vmem:[#allocation3 + $0x128] sm:$0xff]
    %v197 = vld [vmem:[#allocation3 + $0x130] sm:$0xff]
    %v198 = vld [vmem:[#allocation3 + $0x138] sm:$0xff]
    %v199 = vld [vmem:[#allocation3 + $0x140] sm:$0xff]
    %v200 = vld [vmem:[#allocation3 + $0x148] sm:$0xff]
    %v201 = vld [vmem:[#allocation3 + $0x150] sm:$0xff]
    %v202 = vld [vmem:[#allocation3 + $0x158] sm:$0xff]
    %v203 = vld [vmem:[#allocation3 + $0x160] sm:$0xff]
    %v204 = vld [vmem:[#allocation3 + $0x168] sm:$0xff]
    %v205 = vld [vmem:[#allocation3 + $0x170] sm:$0xff]
    %v206 = vld [vmem:[#allocation3 + $0x178] sm:$0xff]
    %v207 = vld [vmem:[#allocation3 + $0x180] sm:$0xff]
    %v208 = vld [vmem:[#allocation3 + $0x188] sm:$0xff]
    %v209 = vld [vmem:[#allocation3 + $0x190] sm:$0xff]
    %v210 = vld [vmem:[#allocation3 + $0x198] sm:$0xff]
    %v211 = vld [vmem:[#allocation3 + $0x1a0] sm:$0xff]
    %v212 = vld [vmem:[#allocation3 + $0x1a8] sm:$0xff]
    %v213 = vld [vmem:[#allocation3 + $0x1b0] sm:$0xff]
    %v214 = vld [vmem:[#allocation3 + $0x1b8] sm:$0xff]
    %v215 = vld [vmem:[#allocation3 + $0x1c0] sm:$0xff]
    %v216 = vld [vmem:[#allocation3 + $0x1c8] sm:$0xff]
    %v217 = vld [vmem:[#allocation3 + $0x1d0] sm:$0xff]
    %v218 = vld [vmem:[#allocation3 + $0x1d8] sm:$0xff]
    %v219 = vld [vmem:[#allocation3 + $0x1e0] sm:$0xff]
    %v220 = vld [vmem:[#allocation3 + $0x1e8] sm:$0xff]
    %v221 = vld [vmem:[#allocation3 + $0x1f0] sm:$0xff]
    %v222 = vld [vmem:[#allocation3 + $0x1f8] sm:$0xff]
    %v223 = vld [vmem:[%s5] sm:$0xf]
    %v225 = vlaneseq
    %v226 = vshrl.u32 %v225, 7
    %v227 = vsub.s32 0, %v226
    %v228 = vrot.slane %v223, %v227
    %v229 = vlaneseq
    %v230 = vshrl.u32 %v229, 7
    %v231 = vsub.s32 1, %v230
    %v232 = vrot.slane %v223, %v231
    %v233 = vlaneseq
    %v234 = vshrl.u32 %v233, 7
    %v235 = vsub.s32 2, %v234
    %v236 = vrot.slane %v223, %v235
    %v237 = vlaneseq
    %v238 = vshrl.u32 %v237, 7
    %v239 = vsub.s32 3, %v238
    %v240 = vrot.slane %v223, %v239
    %v309 = vunpack.c.l.b16 %v159
    %v310 = vunpack.c.h.b16 %v159
    %v311 = vunpack.c.l.b16 %v160
    %v312 = vunpack.c.h.b16 %v160
    %v313 = vunpack.c.l.b16 %v161
    %v314 = vunpack.c.h.b16 %v161
    %v315 = vunpack.c.l.b16 %v162
    %v316 = vunpack.c.h.b16 %v162
    %v317 = vunpack.c.l.b16 %v163
    %v318 = vunpack.c.h.b16 %v163
    %v319 = vunpack.c.l.b16 %v164
    %v320 = vunpack.c.h.b16 %v164
    %v321 = vunpack.c.l.b16 %v165
    %v322 = vunpack.c.h.b16 %v165
    %v323 = vunpack.c.l.b16 %v166
    %v324 = vunpack.c.h.b16 %v166
    %v325 = vunpack.c.l.b16 %v167
    %v326 = vunpack.c.h.b16 %v167
    %v327 = vunpack.c.l.b16 %v168
    %v328 = vunpack.c.h.b16 %v168
    %v329 = vunpack.c.l.b16 %v169
    %v330 = vunpack.c.h.b16 %v169
    %v331 = vunpack.c.l.b16 %v170
    %v332 = vunpack.c.h.b16 %v170
    %v333 = vunpack.c.l.b16 %v171
    %v334 = vunpack.c.h.b16 %v171
    %v335 = vunpack.c.l.b16 %v172
    %v336 = vunpack.c.h.b16 %v172
    %v337 = vunpack.c.l.b16 %v173
    %v338 = vunpack.c.h.b16 %v173
    %v339 = vunpack.c.l.b16 %v174
    %v340 = vunpack.c.h.b16 %v174
    %v341 = vunpack.c.l.b16 %v175
    %v342 = vunpack.c.h.b16 %v175
    %v343 = vunpack.c.l.b16 %v176
    %v344 = vunpack.c.h.b16 %v176
    %v345 = vunpack.c.l.b16 %v177
    %v346 = vunpack.c.h.b16 %v177
    %v347 = vunpack.c.l.b16 %v178
    %v348 = vunpack.c.h.b16 %v178
    %v349 = vunpack.c.l.b16 %v179
    %v350 = vunpack.c.h.b16 %v179
    %v351 = vunpack.c.l.b16 %v180
    %v352 = vunpack.c.h.b16 %v180
    %v353 = vunpack.c.l.b16 %v181
    %v354 = vunpack.c.h.b16 %v181
    %v355 = vunpack.c.l.b16 %v182
    %v356 = vunpack.c.h.b16 %v182
    %v357 = vunpack.c.l.b16 %v183
    %v358 = vunpack.c.h.b16 %v183
    %v359 = vunpack.c.l.b16 %v184
    %v360 = vunpack.c.h.b16 %v184
    %v361 = vunpack.c.l.b16 %v185
    %v362 = vunpack.c.h.b16 %v185
    %v363 = vunpack.c.l.b16 %v186
    %v364 = vunpack.c.h.b16 %v186
    %v365 = vunpack.c.l.b16 %v187
    %v366 = vunpack.c.h.b16 %v187
    %v367 = vunpack.c.l.b16 %v188
    %v368 = vunpack.c.h.b16 %v188
    %v369 = vunpack.c.l.b16 %v189
    %v370 = vunpack.c.h.b16 %v189
    %v371 = vunpack.c.l.b16 %v190
    %v372 = vunpack.c.h.b16 %v190
    %v373 = vunpack.c.l.b16 %v191
    %v374 = vunpack.c.h.b16 %v191
    %v375 = vunpack.c.l.b16 %v192
    %v376 = vunpack.c.h.b16 %v192
    %v377 = vunpack.c.l.b16 %v193
    %v378 = vunpack.c.h.b16 %v193
    %v379 = vunpack.c.l.b16 %v194
    %v380 = vunpack.c.h.b16 %v194
    %v381 = vunpack.c.l.b16 %v195
    %v382 = vunpack.c.h.b16 %v195
    %v383 = vunpack.c.l.b16 %v196
    %v384 = vunpack.c.h.b16 %v196
    %v385 = vunpack.c.l.b16 %v197
    %v386 = vunpack.c.h.b16 %v197
    %v387 = vunpack.c.l.b16 %v198
    %v388 = vunpack.c.h.b16 %v198
    %v389 = vunpack.c.l.b16 %v199
    %v390 = vunpack.c.h.b16 %v199
    %v391 = vunpack.c.l.b16 %v200
    %v392 = vunpack.c.h.b16 %v200
    %v393 = vunpack.c.l.b16 %v201
    %v394 = vunpack.c.h.b16 %v201
    %v395 = vunpack.c.l.b16 %v202
    %v396 = vunpack.c.h.b16 %v202
    %v397 = vunpack.c.l.b16 %v203
    %v398 = vunpack.c.h.b16 %v203
    %v399 = vunpack.c.l.b16 %v204
    %v400 = vunpack.c.h.b16 %v204
    %v401 = vunpack.c.l.b16 %v205
    %v402 = vunpack.c.h.b16 %v205
    %v403 = vunpack.c.l.b16 %v206
    %v404 = vunpack.c.h.b16 %v206
    %v405 = vunpack.c.l.b16 %v207
    %v406 = vunpack.c.h.b16 %v207
    %v407 = vunpack.c.l.b16 %v208
    %v408 = vunpack.c.h.b16 %v208
    %v409 = vunpack.c.l.b16 %v209
    %v410 = vunpack.c.h.b16 %v209
    %v411 = vunpack.c.l.b16 %v210
    %v412 = vunpack.c.h.b16 %v210
    %v413 = vunpack.c.l.b16 %v211
    %v414 = vunpack.c.h.b16 %v211
    %v415 = vunpack.c.l.b16 %v212
    %v416 = vunpack.c.h.b16 %v212
    %v417 = vunpack.c.l.b16 %v213
    %v418 = vunpack.c.h.b16 %v213
    %v419 = vunpack.c.l.b16 %v214
    %v420 = vunpack.c.h.b16 %v214
    %v421 = vunpack.c.l.b16 %v215
    %v422 = vunpack.c.h.b16 %v215
    %v423 = vunpack.c.l.b16 %v216
    %v424 = vunpack.c.h.b16 %v216
    %v425 = vunpack.c.l.b16 %v217
    %v426 = vunpack.c.h.b16 %v217
    %v427 = vunpack.c.l.b16 %v218
    %v428 = vunpack.c.h.b16 %v218
    %v429 = vunpack.c.l.b16 %v219
    %v430 = vunpack.c.h.b16 %v219
    %v431 = vunpack.c.l.b16 %v220
    %v432 = vunpack.c.h.b16 %v220
    %v433 = vunpack.c.l.b16 %v221
    %v434 = vunpack.c.h.b16 %v221
    %v435 = vunpack.c.l.b16 %v222
    %v436 = vunpack.c.h.b16 %v222
    %v437 = vpack.c.b16 %v313, %v309
    %v438 = vpack.c.b16 %v314, %v310
    %v439 = vpack.c.b16 %v315, %v311
    %v440 = vpack.c.b16 %v316, %v312
    %v441 = vpack.c.b16 %v321, %v317
    %v442 = vpack.c.b16 %v322, %v318
    %v443 = vpack.c.b16 %v323, %v319
    %v444 = vpack.c.b16 %v324, %v320
    %v445 = vpack.c.b16 %v329, %v325
    %v446 = vpack.c.b16 %v330, %v326
    %v447 = vpack.c.b16 %v331, %v327
    %v448 = vpack.c.b16 %v332, %v328
    %v449 = vpack.c.b16 %v337, %v333
    %v450 = vpack.c.b16 %v338, %v334
    %v451 = vpack.c.b16 %v339, %v335
    %v452 = vpack.c.b16 %v340, %v336
    %v453 = vpack.c.b16 %v345, %v341
    %v454 = vpack.c.b16 %v346, %v342
    %v455 = vpack.c.b16 %v347, %v343
    %v456 = vpack.c.b16 %v348, %v344
    %v457 = vpack.c.b16 %v353, %v349
    %v458 = vpack.c.b16 %v354, %v350
    %v459 = vpack.c.b16 %v355, %v351
    %v460 = vpack.c.b16 %v356, %v352
    %v461 = vpack.c.b16 %v361, %v357
    %v462 = vpack.c.b16 %v362, %v358
    %v463 = vpack.c.b16 %v363, %v359
    %v464 = vpack.c.b16 %v364, %v360
    %v465 = vpack.c.b16 %v369, %v365
    %v466 = vpack.c.b16 %v370, %v366
    %v467 = vpack.c.b16 %v371, %v367
    %v468 = vpack.c.b16 %v372, %v368
    %v469 = vpack.c.b16 %v377, %v373
    %v470 = vpack.c.b16 %v378, %v374
    %v471 = vpack.c.b16 %v379, %v375
    %v472 = vpack.c.b16 %v380, %v376
    %v473 = vpack.c.b16 %v385, %v381
    %v474 = vpack.c.b16 %v386, %v382
    %v475 = vpack.c.b16 %v387, %v383
    %v476 = vpack.c.b16 %v388, %v384
    %v477 = vpack.c.b16 %v393, %v389
    %v478 = vpack.c.b16 %v394, %v390
    %v479 = vpack.c.b16 %v395, %v391
    %v480 = vpack.c.b16 %v396, %v392
    %v481 = vpack.c.b16 %v401, %v397
    %v482 = vpack.c.b16 %v402, %v398
    %v483 = vpack.c.b16 %v403, %v399
    %v484 = vpack.c.b16 %v404, %v400
    %v485 = vpack.c.b16 %v409, %v405
    %v486 = vpack.c.b16 %v410, %v406
    %v487 = vpack.c.b16 %v411, %v407
    %v488 = vpack.c.b16 %v412, %v408
    %v489 = vpack.c.b16 %v417, %v413
    %v490 = vpack.c.b16 %v418, %v414
    %v491 = vpack.c.b16 %v419, %v415
    %v492 = vpack.c.b16 %v420, %v416
    %v493 = vpack.c.b16 %v425, %v421
    %v494 = vpack.c.b16 %v426, %v422
    %v495 = vpack.c.b16 %v427, %v423
    %v496 = vpack.c.b16 %v428, %v424
    %v497 = vpack.c.b16 %v433, %v429
    %v498 = vpack.c.b16 %v434, %v430
    %v499 = vpack.c.b16 %v435, %v431
    %v500 = vpack.c.b16 %v436, %v432
    %565 = vmatprep.subr.bf16.mxu0 %v438
    %566 = vmatpush1.bf16.msra.mxu0 %v437
    %567 = vmatprep.subr.bf16.mxu0 %v442
    %568 = vmatpush1.bf16.msra.mxu0 %v441
    %569 = vmatprep.subr.bf16.mxu0 %v446
    %570 = vmatpush1.bf16.msra.mxu0 %v445
    %571 = vmatprep.subr.bf16.mxu0 %v450
    %572 = vmatpush1.bf16.msra.mxu0 %v449
    %573 = vmatprep.subr.bf16.mxu0 %v454
    %574 = vmatpush1.bf16.msra.mxu0 %v453
    %575 = vmatprep.subr.bf16.mxu0 %v458
    %576 = vmatpush1.bf16.msra.mxu0 %v457
    %577 = vmatprep.subr.bf16.mxu0 %v462
    %578 = vmatpush1.bf16.msra.mxu0 %v461
    %579 = vmatprep.subr.bf16.mxu0 %v466
    %580 = vmatpush1.bf16.msra.mxu0 %v465
    %581 = vmatprep.subr.bf16.mxu0 %v470
    %582 = vmatpush1.bf16.msra.mxu0 %v469
    %583 = vmatprep.subr.bf16.mxu0 %v474
    %584 = vmatpush1.bf16.msra.mxu0 %v473
    %585 = vmatprep.subr.bf16.mxu0 %v478
    %586 = vmatpush1.bf16.msra.mxu0 %v477
    %587 = vmatprep.subr.bf16.mxu0 %v482
    %588 = vmatpush1.bf16.msra.mxu0 %v481
    %589 = vmatprep.subr.bf16.mxu0 %v486
    %590 = vmatpush1.bf16.msra.mxu0 %v485
    %591 = vmatprep.subr.bf16.mxu0 %v490
    %592 = vmatpush1.bf16.msra.mxu0 %v489
    %593 = vmatprep.subr.bf16.mxu0 %v494
    %594 = vmatpush1.bf16.msra.mxu0 %v493
    %595 = vmatprep.subr.bf16.mxu0 %v498
    %596 = vmatpush1.bf16.msra.mxu0 %v497
    %597 = vmatprep.mubr.bf16.mxu0 %v158
    %598 = vmatmul.mubr.bf16.gmra.mrb[0].mxu0 %v157
    %v599 = vpop.f32.mrb[0].mxu0
    %v600 = vadd.f32 %v228, %v599
    %v601 = vpop.f32.mrb[0].mxu0
    %v602 = vadd.f32 %v232, %v601
    %v603 = vpop.f32.mrb[0].mxu0
    %v604 = vpop.f32.mrb[0].mxu0
    %605 = vdwg.mxu0
    %606 = vmatprep.subr.bf16.mxu0 %v440
    %607 = vmatpush1.bf16.msra.mxu0 %v439
    %608 = vmatprep.subr.bf16.mxu0 %v444
    %609 = vmatpush1.bf16.msra.mxu0 %v443
    %610 = vmatprep.subr.bf16.mxu0 %v448
    %611 = vmatpush1.bf16.msra.mxu0 %v447
    %612 = vmatprep.subr.bf16.mxu0 %v452
    %613 = vmatpush1.bf16.msra.mxu0 %v451
    %614 = vmatprep.subr.bf16.mxu0 %v456
    %615 = vmatpush1.bf16.msra.mxu0 %v455
    %616 = vmatprep.subr.bf16.mxu0 %v460
    %617 = vmatpush1.bf16.msra.mxu0 %v459
    %618 = vmatprep.subr.bf16.mxu0 %v464
    %619 = vmatpush1.bf16.msra.mxu0 %v463
    %620 = vmatprep.subr.bf16.mxu0 %v468
    %621 = vmatpush1.bf16.msra.mxu0 %v467
    %622 = vmatprep.subr.bf16.mxu0 %v472
    %623 = vmatpush1.bf16.msra.mxu0 %v471
    %624 = vmatprep.subr.bf16.mxu0 %v476
    %625 = vmatpush1.bf16.msra.mxu0 %v475
    %626 = vmatprep.subr.bf16.mxu0 %v480
    %627 = vmatpush1.bf16.msra.mxu0 %v479
    %628 = vmatprep.subr.bf16.mxu0 %v484
    %629 = vmatpush1.bf16.msra.mxu0 %v483
    %630 = vmatprep.subr.bf16.mxu0 %v488
    %631 = vmatpush1.bf16.msra.mxu0 %v487
    %632 = vmatprep.subr.bf16.mxu0 %v492
    %633 = vmatpush1.bf16.msra.mxu0 %v491
    %634 = vmatprep.subr.bf16.mxu0 %v496
    %635 = vmatpush1.bf16.msra.mxu0 %v495
    %636 = vmatprep.subr.bf16.mxu0 %v500
    %637 = vmatpush1.bf16.msra.mxu0 %v499
    %638 = vmatprep.mubr.bf16.mxu0 %v158
    %639 = vmatmul.mubr.bf16.gmra.mrb[0].mxu0 %v157
    %v640 = vpop.f32.mrb[0].mxu0
    %v641 = vadd.f32 %v236, %v640
    %v642 = vpop.f32.mrb[0].mxu0
    %v643 = vadd.f32 %v240, %v642
    %v644 = vpop.f32.mrb[0].mxu0
    %v645 = vpop.f32.mrb[0].mxu0
    %646 = vdwg.mxu0
    %v647 = vmax.f32 %v600, 0.0
    %v648 = vmax.f32 %v602, 0.0
    %v649 = vmax.f32 %v641, 0.0
    %v650 = vmax.f32 %v643, 0.0
    %v651 = vpack.c.bf16 %v647, %v647
    %v652 = vpack.c.bf16 %v648, %v648
    %v653 = vpack.c.bf16 %v649, %v649
    %v654 = vpack.c.bf16 %v650, %v650
    %v655 = vld [vmem:[#allocation5] sm:$0xf]
    %v656 = vld [vmem:[#allocation5 + $0x4] sm:$0xf]
    %v657 = vld [vmem:[#allocation5 + $0x8] sm:$0xf]
    %v658 = vld [vmem:[#allocation5 + $0xc] sm:$0xf]
    %v659 = vld [vmem:[#allocation5 + $0x10] sm:$0xf]
    %v660 = vld [vmem:[#allocation5 + $0x14] sm:$0xf]
    %v661 = vld [vmem:[#allocation5 + $0x18] sm:$0xf]
    %v662 = vld [vmem:[#allocation5 + $0x1c] sm:$0xf]
    %v663 = vld [vmem:[#allocation5 + $0x20] sm:$0xf]
    %v664 = vld [vmem:[#allocation5 + $0x24] sm:$0xf]
    %v665 = vld [vmem:[#allocation5 + $0x28] sm:$0xf]
    %v666 = vld [vmem:[#allocation5 + $0x2c] sm:$0xf]
    %v667 = vld [vmem:[#allocation5 + $0x30] sm:$0xf]
    %v668 = vld [vmem:[#allocation5 + $0x34] sm:$0xf]
    %v669 = vld [vmem:[#allocation5 + $0x38] sm:$0xf]
    %v670 = vld [vmem:[#allocation5 + $0x3c] sm:$0xf]
    %v671 = vld [vmem:[#allocation5 + $0x40] sm:$0xf]
    %v672 = vld [vmem:[#allocation5 + $0x44] sm:$0xf]
    %v673 = vld [vmem:[#allocation5 + $0x48] sm:$0xf]
    %v674 = vld [vmem:[#allocation5 + $0x4c] sm:$0xf]
    %v675 = vld [vmem:[#allocation5 + $0x50] sm:$0xf]
    %v676 = vld [vmem:[#allocation5 + $0x54] sm:$0xf]
    %v677 = vld [vmem:[#allocation5 + $0x58] sm:$0xf]
    %v678 = vld [vmem:[#allocation5 + $0x5c] sm:$0xf]
    %v679 = vld [vmem:[#allocation5 + $0x60] sm:$0xf]
    %v680 = vld [vmem:[#allocation5 + $0x64] sm:$0xf]
    %v681 = vld [vmem:[#allocation5 + $0x68] sm:$0xf]
    %v682 = vld [vmem:[#allocation5 + $0x6c] sm:$0xf]
    %v683 = vld [vmem:[#allocation5 + $0x70] sm:$0xf]
    %v684 = vld [vmem:[#allocation5 + $0x74] sm:$0xf]
    %v685 = vld [vmem:[#allocation5 + $0x78] sm:$0xf]
    %v686 = vld [vmem:[#allocation5 + $0x7c] sm:$0xf]
    %v687 = vld [vmem:[#allocation5 + $0x80] sm:$0xf]
    %v688 = vld [vmem:[#allocation5 + $0x84] sm:$0xf]
    %v689 = vld [vmem:[#allocation5 + $0x88] sm:$0xf]
    %v690 = vld [vmem:[#allocation5 + $0x8c] sm:$0xf]
    %v691 = vld [vmem:[#allocation5 + $0x90] sm:$0xf]
    %v692 = vld [vmem:[#allocation5 + $0x94] sm:$0xf]
    %v693 = vld [vmem:[#allocation5 + $0x98] sm:$0xf]
    %v694 = vld [vmem:[#allocation5 + $0x9c] sm:$0xf]
    %v695 = vld [vmem:[#allocation5 + $0xa0] sm:$0xf]
    %v696 = vld [vmem:[#allocation5 + $0xa4] sm:$0xf]
    %v697 = vld [vmem:[#allocation5 + $0xa8] sm:$0xf]
    %v698 = vld [vmem:[#allocation5 + $0xac] sm:$0xf]
    %v699 = vld [vmem:[#allocation5 + $0xb0] sm:$0xf]
    %v700 = vld [vmem:[#allocation5 + $0xb4] sm:$0xf]
    %v701 = vld [vmem:[#allocation5 + $0xb8] sm:$0xf]
    %v702 = vld [vmem:[#allocation5 + $0xbc] sm:$0xf]
    %v703 = vld [vmem:[#allocation5 + $0xc0] sm:$0xf]
    %v704 = vld [vmem:[#allocation5 + $0xc4] sm:$0xf]
    %v705 = vld [vmem:[#allocation5 + $0xc8] sm:$0xf]
    %v706 = vld [vmem:[#allocation5 + $0xcc] sm:$0xf]
    %v707 = vld [vmem:[#allocation5 + $0xd0] sm:$0xf]
    %v708 = vld [vmem:[#allocation5 + $0xd4] sm:$0xf]
    %v709 = vld [vmem:[#allocation5 + $0xd8] sm:$0xf]
    %v710 = vld [vmem:[#allocation5 + $0xdc] sm:$0xf]
    %v711 = vld [vmem:[#allocation5 + $0xe0] sm:$0xf]
    %v712 = vld [vmem:[#allocation5 + $0xe4] sm:$0xf]
    %v713 = vld [vmem:[#allocation5 + $0xe8] sm:$0xf]
    %v714 = vld [vmem:[#allocation5 + $0xec] sm:$0xf]
    %v715 = vld [vmem:[#allocation5 + $0xf0] sm:$0xf]
    %v716 = vld [vmem:[#allocation5 + $0xf4] sm:$0xf]
    %v717 = vld [vmem:[#allocation5 + $0xf8] sm:$0xf]
    %v718 = vld [vmem:[#allocation5 + $0xfc] sm:$0xf]
    %v719 = vld [vmem:[%s7] sm:$0x1]
    %v721 = vlaneseq
    %v722 = vshrl.u32 %v721, 7
    %v723 = vsub.s32 0, %v722
    %v724 = vrot.slane %v719, %v723
    %v790 = vunpack.c.l.b16 %v655
    %v791 = vunpack.c.l.b16 %v656
    %v792 = vunpack.c.l.b16 %v657
    %v793 = vunpack.c.l.b16 %v658
    %v794 = vunpack.c.l.b16 %v659
    %v795 = vunpack.c.l.b16 %v660
    %v796 = vunpack.c.l.b16 %v661
    %v797 = vunpack.c.l.b16 %v662
    %v798 = vunpack.c.l.b16 %v663
    %v799 = vunpack.c.l.b16 %v664
    %v800 = vunpack.c.l.b16 %v665
    %v801 = vunpack.c.l.b16 %v666
    %v802 = vunpack.c.l.b16 %v667
    %v803 = vunpack.c.l.b16 %v668
    %v804 = vunpack.c.l.b16 %v669
    %v805 = vunpack.c.l.b16 %v670
    %v806 = vunpack.c.l.b16 %v671
    %v807 = vunpack.c.l.b16 %v672
    %v808 = vunpack.c.l.b16 %v673
    %v809 = vunpack.c.l.b16 %v674
    %v810 = vunpack.c.l.b16 %v675
    %v811 = vunpack.c.l.b16 %v676
    %v812 = vunpack.c.l.b16 %v677
    %v813 = vunpack.c.l.b16 %v678
    %v814 = vunpack.c.l.b16 %v679
    %v815 = vunpack.c.l.b16 %v680
    %v816 = vunpack.c.l.b16 %v681
    %v817 = vunpack.c.l.b16 %v682
    %v818 = vunpack.c.l.b16 %v683
    %v819 = vunpack.c.l.b16 %v684
    %v820 = vunpack.c.l.b16 %v685
    %v821 = vunpack.c.l.b16 %v686
    %v822 = vunpack.c.l.b16 %v687
    %v823 = vunpack.c.l.b16 %v688
    %v824 = vunpack.c.l.b16 %v689
    %v825 = vunpack.c.l.b16 %v690
    %v826 = vunpack.c.l.b16 %v691
    %v827 = vunpack.c.l.b16 %v692
    %v828 = vunpack.c.l.b16 %v693
    %v829 = vunpack.c.l.b16 %v694
    %v830 = vunpack.c.l.b16 %v695
    %v831 = vunpack.c.l.b16 %v696
    %v832 = vunpack.c.l.b16 %v697
    %v833 = vunpack.c.l.b16 %v698
    %v834 = vunpack.c.l.b16 %v699
    %v835 = vunpack.c.l.b16 %v700
    %v836 = vunpack.c.l.b16 %v701
    %v837 = vunpack.c.l.b16 %v702
    %v838 = vunpack.c.l.b16 %v703
    %v839 = vunpack.c.l.b16 %v704
    %v840 = vunpack.c.l.b16 %v705
    %v841 = vunpack.c.l.b16 %v706
    %v842 = vunpack.c.l.b16 %v707
    %v843 = vunpack.c.l.b16 %v708
    %v844 = vunpack.c.l.b16 %v709
    %v845 = vunpack.c.l.b16 %v710
    %v846 = vunpack.c.l.b16 %v711
    %v847 = vunpack.c.l.b16 %v712
    %v848 = vunpack.c.l.b16 %v713
    %v849 = vunpack.c.l.b16 %v714
    %v850 = vunpack.c.l.b16 %v715
    %v851 = vunpack.c.l.b16 %v716
    %v852 = vunpack.c.l.b16 %v717
    %v853 = vunpack.c.l.b16 %v718
    %v854 = vpack.c.b16 %v791, %v790
    %v855 = vpack.c.b16 %v793, %v792
    %v856 = vpack.c.b16 %v795, %v794
    %v857 = vpack.c.b16 %v797, %v796
    %v858 = vpack.c.b16 %v799, %v798
    %v859 = vpack.c.b16 %v801, %v800
    %v860 = vpack.c.b16 %v803, %v802
    %v861 = vpack.c.b16 %v805, %v804
    %v862 = vpack.c.b16 %v807, %v806
    %v863 = vpack.c.b16 %v809, %v808
    %v864 = vpack.c.b16 %v811, %v810
    %v865 = vpack.c.b16 %v813, %v812
    %v866 = vpack.c.b16 %v815, %v814
    %v867 = vpack.c.b16 %v817, %v816
    %v868 = vpack.c.b16 %v819, %v818
    %v869 = vpack.c.b16 %v821, %v820
    %v870 = vpack.c.b16 %v823, %v822
    %v871 = vpack.c.b16 %v825, %v824
    %v872 = vpack.c.b16 %v827, %v826
    %v873 = vpack.c.b16 %v829, %v828
    %v874 = vpack.c.b16 %v831, %v830
    %v875 = vpack.c.b16 %v833, %v832
    %v876 = vpack.c.b16 %v835, %v834
    %v877 = vpack.c.b16 %v837, %v836
    %v878 = vpack.c.b16 %v839, %v838
    %v879 = vpack.c.b16 %v841, %v840
    %v880 = vpack.c.b16 %v843, %v842
    %v881 = vpack.c.b16 %v845, %v844
    %v882 = vpack.c.b16 %v847, %v846
    %v883 = vpack.c.b16 %v849, %v848
    %v884 = vpack.c.b16 %v851, %v850
    %v885 = vpack.c.b16 %v853, %v852
    %918 = vmatprep.subr.bf16.mxu0 0
    %919 = vmatpush1.bf16.msra.mxu0 %v854
    %920 = vmatprep.subr.bf16.mxu0 0
    %921 = vmatpush1.bf16.msra.mxu0 %v855
    %922 = vmatprep.subr.bf16.mxu0 0
    %923 = vmatpush1.bf16.msra.mxu0 %v856
    %924 = vmatprep.subr.bf16.mxu0 0
    %925 = vmatpush1.bf16.msra.mxu0 %v857
    %926 = vmatprep.subr.bf16.mxu0 0
    %927 = vmatpush1.bf16.msra.mxu0 %v858
    %928 = vmatprep.subr.bf16.mxu0 0
    %929 = vmatpush1.bf16.msra.mxu0 %v859
    %930 = vmatprep.subr.bf16.mxu0 0
    %931 = vmatpush1.bf16.msra.mxu0 %v860
    %932 = vmatprep.subr.bf16.mxu0 0
    %933 = vmatpush1.bf16.msra.mxu0 %v861
    %934 = vmatprep.subr.bf16.mxu0 0
    %935 = vmatpush1.bf16.msra.mxu0 %v862
    %936 = vmatprep.subr.bf16.mxu0 0
    %937 = vmatpush1.bf16.msra.mxu0 %v863
    %938 = vmatprep.subr.bf16.mxu0 0
    %939 = vmatpush1.bf16.msra.mxu0 %v864
    %940 = vmatprep.subr.bf16.mxu0 0
    %941 = vmatpush1.bf16.msra.mxu0 %v865
    %942 = vmatprep.subr.bf16.mxu0 0
    %943 = vmatpush1.bf16.msra.mxu0 %v866
    %944 = vmatprep.subr.bf16.mxu0 0
    %945 = vmatpush1.bf16.msra.mxu0 %v867
    %946 = vmatprep.subr.bf16.mxu0 0
    %947 = vmatpush1.bf16.msra.mxu0 %v868
    %948 = vmatprep.subr.bf16.mxu0 0
    %949 = vmatpush1.bf16.msra.mxu0 %v869
    %950 = vmatprep.mubr.bf16.mxu0 %v652
    %951 = vmatmul.mubr.bf16.gmra.mrb[0].mxu0 %v651
    %v952 = vpop.f32.mrb[0].mxu0
    %v953 = vadd.f32 %v724, %v952
    %v954 = vpop.f32.mrb[0].mxu0
    %v955 = vpop.f32.mrb[0].mxu0
    %v956 = vpop.f32.mrb[0].mxu0
    %957 = vdwg.mxu0
    %958 = vmatprep.subr.bf16.mxu0 0
    %959 = vmatpush1.bf16.msra.mxu0 %v870
    %960 = vmatprep.subr.bf16.mxu0 0
    %961 = vmatpush1.bf16.msra.mxu0 %v871
    %962 = vmatprep.subr.bf16.mxu0 0
    %963 = vmatpush1.bf16.msra.mxu0 %v872
    %964 = vmatprep.subr.bf16.mxu0 0
    %965 = vmatpush1.bf16.msra.mxu0 %v873
    %966 = vmatprep.subr.bf16.mxu0 0
    %967 = vmatpush1.bf16.msra.mxu0 %v874
    %968 = vmatprep.subr.bf16.mxu0 0
    %969 = vmatpush1.bf16.msra.mxu0 %v875
    %970 = vmatprep.subr.bf16.mxu0 0
    %971 = vmatpush1.bf16.msra.mxu0 %v876
    %972 = vmatprep.subr.bf16.mxu0 0
    %973 = vmatpush1.bf16.msra.mxu0 %v877
    %974 = vmatprep.subr.bf16.mxu0 0
    %975 = vmatpush1.bf16.msra.mxu0 %v878
    %976 = vmatprep.subr.bf16.mxu0 0
    %977 = vmatpush1.bf16.msra.mxu0 %v879
    %978 = vmatprep.subr.bf16.mxu0 0
    %979 = vmatpush1.bf16.msra.mxu0 %v880
    %980 = vmatprep.subr.bf16.mxu0 0
    %981 = vmatpush1.bf16.msra.mxu0 %v881
    %982 = vmatprep.subr.bf16.mxu0 0
    %983 = vmatpush1.bf16.msra.mxu0 %v882
    %984 = vmatprep.subr.bf16.mxu0 0
    %985 = vmatpush1.bf16.msra.mxu0 %v883
    %986 = vmatprep.subr.bf16.mxu0 0
    %987 = vmatpush1.bf16.msra.mxu0 %v884
    %988 = vmatprep.subr.bf16.mxu0 0
    %989 = vmatpush1.bf16.msra.mxu0 %v885
    %990 = vmatprep.mubr.bf16.mxu0 %v654
    %991 = vmatmul.mubr.bf16.gmra.mrb[0].mxu0 %v653
    %v992 = vpop.f32.mrb[0].mxu0
    %v993 = vadd.f32 %v953, %v992
    %v994 = vpop.f32.mrb[0].mxu0
    %v995 = vpop.f32.mrb[0].mxu0
    %v996 = vpop.f32.mrb[0].mxu0
    %997 = vdwg.mxu0
    %v998 = vtanh.pop %v993
    %999 = vst [vmem:[%s8] sm:$0xff] %v998
    // Predicated region
    $region42: #{generator_forward.1} parent=1 // pred_check
      _
    $region43: #{generator_forward.1} parent=1 // pred_check_branch
      %1001 = sbr.rel (0) target = $region45
    $region44: #{generator_forward.1} parent=1 // pred_region
      _
    $region45: #{generator_forward.1} parent=1 // pred_fallthru
      _
    // Predicated region
    $region46: #{generator_forward.1} parent=1 // pred_check
      _
    $region47: #{generator_forward.1} parent=1 // pred_check_branch
      %1003 = sbr.rel (0) target = $region49
    $region48: #{generator_forward.1} parent=1 // pred_region
      _
    $region49: #{generator_forward.1} parent=1 // pred_fallthru
      _
    %1004 = vsyncpa [#allocation4], 1
    %1005 = vsyncpa [#allocation6], 1

</llo_original>
